<compile_context>
chip_gen: v7x
topology: tpu7x:2x2x1
jax: 0.10.0
libtpu: 0.0.40
codegen_flags: <defaults>
</compile_context>

<pallas_src>
import functools

import jax
import jax.numpy as jnp
from jax import lax
from jax.experimental import pallas as pl
from jax.experimental.pallas import tpu as pltpu


# --------------------------- generation-aware budgets ---------------------------

def _vmem_capacity_bytes():
    try:
        return int(pltpu.get_tpu_info().vmem_capacity_bytes)
    except Exception:
        return 64 * 1024 * 1024          # conservative (v7x-sized) fallback


_VMEM_CAP = _vmem_capacity_bytes()
# Scoped VMEM limit: ~60% of physical, capped at 96 MiB.
#   v5e/v6e (128 MiB) -> ~77 MiB ; v7x (64 MiB) -> ~38 MiB.
_VMEM_LIMIT = min(int(_VMEM_CAP * 0.6), 96 * 1024 * 1024)
_BIG_VMEM = _VMEM_CAP >= 100 * 1024 * 1024          # 128 MiB parts (v5e/v6e)


def _sublane_granule(dtype):
    """Minimum second-to-last-dim tile for a dtype (8/16/32 for 4/2/1 bytes)."""
    return {4: 8, 2: 16, 1: 32}.get(jnp.dtype(dtype).itemsize, 8)


def _pick_tile(dim, preferred, granule):
    """Largest tile <= preferred that divides `dim` and is a multiple of
    `granule`; otherwise fall back to the full dimension (always legal)."""
    t = preferred
    while t >= granule:
        if dim % t == 0 and t % granule == 0:
            return t
        t //= 2
    return dim


# ----------------------------- tiled linear kernels ------------------------------

def _matmul_kernel(x_ref, w_ref, o_ref, acc_ref):
    @pl.when(pl.program_id(2) == 0)
    def _():
        acc_ref[...] = jnp.zeros_like(acc_ref)

    acc_ref[...] += jnp.dot(x_ref[...], w_ref[...],
                            preferred_element_type=jnp.float32)

    @pl.when(pl.program_id(2) == pl.num_programs(2) - 1)
    def _():
        o_ref[...] = acc_ref[...].astype(o_ref.dtype)


def _matmul_bias_kernel(x_ref, w_ref, b_ref, o_ref, acc_ref):
    @pl.when(pl.program_id(2) == 0)
    def _():
        acc_ref[...] = jnp.zeros_like(acc_ref)

    acc_ref[...] += jnp.dot(x_ref[...], w_ref[...],
                            preferred_element_type=jnp.float32)

    @pl.when(pl.program_id(2) == pl.num_programs(2) - 1)
    def _():
        o_ref[...] = (acc_ref[...] + b_ref[...]).astype(o_ref.dtype)


def pallas_linear(x2d, wt, b=None, *, tm=None, tn=None, tk=512):
    """y = x2d @ wt (+ b).  x2d: (M, K), wt: (K, N) (already transposed)."""
    M, K = x2d.shape
    K2, N = wt.shape
    assert K == K2

    # Generation-aware tile defaults: bigger tiles on 128 MiB VMEM parts.
    pref_mn = 512 if _BIG_VMEM else 256
    gran = _sublane_granule(x2d.dtype)
    tm = _pick_tile(M, tm or pref_mn, gran)
    tn = _pick_tile(N, tn or pref_mn, 128)
    tk = _pick_tile(K, tk, 128)
    grid = (M // tm, N // tn, K // tk)

    compiler_params = pltpu.CompilerParams(
        dimension_semantics=("parallel", "parallel", "arbitrary"),
        vmem_limit_bytes=_VMEM_LIMIT,
    )
    scratch = [pltpu.VMEM((tm, tn), jnp.float32)]

    if b is None:
        return pl.pallas_call(
            _matmul_kernel,
            out_shape=jax.ShapeDtypeStruct((M, N), x2d.dtype),
            grid=grid,
            in_specs=[
                pl.BlockSpec((tm, tk), lambda i, j, k: (i, k)),
                pl.BlockSpec((tk, tn), lambda i, j, k: (k, j)),
            ],
            out_specs=pl.BlockSpec((tm, tn), lambda i, j, k: (i, j)),
            scratch_shapes=scratch,
            compiler_params=compiler_params,
        )(x2d, wt)

    b2d = b.reshape(1, N)
    return pl.pallas_call(
        _matmul_bias_kernel,
        out_shape=jax.ShapeDtypeStruct((M, N), x2d.dtype),
        grid=grid,
        in_specs=[
            pl.BlockSpec((tm, tk), lambda i, j, k: (i, k)),
            pl.BlockSpec((tk, tn), lambda i, j, k: (k, j)),
            pl.BlockSpec((1, tn), lambda i, j, k: (0, j)),
        ],
        out_specs=pl.BlockSpec((tm, tn), lambda i, j, k: (i, j)),
        scratch_shapes=scratch,
        compiler_params=compiler_params,
    )(x2d, wt, b2d)


# ------------------------ fused attention (+ out_proj) kernel ------------------------

def _attn_block_kernel(q_ref, kv_ref, wo_ref, b_ref, o_ref, attn_ref, ctx_ref,
                       *, num_heads, head_dim):
    # Per-(batch, query-tile) views:
    #   q_ref   : (tq, C)      scale already folded into the Q projection
    #   kv_ref  : (Nk, 2C)     fused K|V projection output (resident per batch)
    #   wo_ref  : (C, C)       out_proj weight, pre-transposed (C_in, C_out)
    #   b_ref   : (1, C)       out_proj bias
    #   o_ref   : (tq, C)      lane-dense output tile
    #   attn_ref: (H, tq, Nk)  attention-weights tile
    #   ctx_ref : (tq, C) f32  VMEM scratch accumulating per-head contexts
    C = num_heads * head_dim
    q = q_ref[...]
    kv = kv_ref[...]
    k = kv[:, :C]
    v = kv[:, C:]

    for h in range(num_heads):          # static unroll over heads
        sl = slice(h * head_dim, (h + 1) * head_dim)
        qh = q[:, sl]                    # (tq, D)
        kh = k[:, sl]                    # (Nk, D)
        vh = v[:, sl]                    # (Nk, D)

        # scores: contract on head_dim directly — no explicit k.T transpose.
        s = lax.dot_general(qh, kh, (((1,), (1,)), ((), ())),
                            preferred_element_type=jnp.float32)   # (tq, Nk)
        s = s - jnp.max(s, axis=-1, keepdims=True)
        p = jnp.exp(s)
        # Exact normalization: the reciprocal is over a (tq, 1) column only,
        # so cost is negligible and the returned attn weights are exact.
        p = p * (1.0 / jnp.sum(p, axis=-1, keepdims=True))

        attn_ref[h] = p.astype(attn_ref.dtype)
        # Write this head's context straight into the (tq, C) scratch — no
        # lane-dim concatenate, no long-lived per-head intermediates.
        ctx_ref[:, sl] = jnp.dot(p.astype(vh.dtype), vh,
                                 preferred_element_type=jnp.float32)

    # Fused output projection: context never leaves VMEM.
    out = jnp.dot(ctx_ref[...].astype(wo_ref.dtype), wo_ref[...],
                  preferred_element_type=jnp.float32)              # (tq, C)
    o_ref[...] = (out + b_ref[...]).astype(o_ref.dtype)


def pallas_attention(q, kv, wo_t, b2d, *, num_heads, attn_dtype=None,
                     tq_preferred=256):
    """q: (B, Nq, C) pre-scaled; kv: (B, Nk, 2C) fused K|V.
    Returns (out (B, Nq, C) incl. out_proj+bias, attn (B, H, Nq, Nk))."""
    B, Nq, C = q.shape
    _, Nk, C2 = kv.shape
    assert C2 == 2 * C
    D = C // num_heads
    attn_dtype = q.dtype if attn_dtype is None else attn_dtype

    # ----- pick the query tile so the per-step working set fits VMEM -----
    gran = _sublane_granule(q.dtype)
    in_bytes = jnp.dtype(q.dtype).itemsize
    attn_bytes = jnp.dtype(attn_dtype).itemsize

    def step_bytes(t):
        return (2 * t * C * in_bytes                    # q tile (x2 buffers)
                + 2 * Nk * 2 * C * in_bytes             # fused kv
                + 2 * C * C * in_bytes + 2 * C * in_bytes   # wo + bias
                + 2 * t * C * in_bytes                  # out tile
                + 2 * num_heads * t * Nk * attn_bytes   # attn tile
                + t * C * 4)                            # ctx scratch (f32)

    tq = _pick_tile(Nq, tq_preferred, gran)
    candidates = [tq]
    while (tq // 2) >= gran and Nq % (tq // 2) == 0 and (tq // 2) % gran == 0:
        tq //= 2
        candidates.append(tq)
    tq = next((c for c in candidates if step_bytes(c) <= _VMEM_LIMIT),
              candidates[-1])

    grid = (B, Nq // tq)
    kernel = functools.partial(_attn_block_kernel,
                               num_heads=num_heads, head_dim=D)
    return pl.pallas_call(
        kernel,
        grid=grid,
        out_shape=(
            jax.ShapeDtypeStruct((B, Nq, C), q.dtype),
            jax.ShapeDtypeStruct((B, num_heads, Nq, Nk), attn_dtype),
        ),
        in_specs=[
            pl.BlockSpec((None, tq, C), lambda b, i: (b, i, 0)),       # q tile
            pl.BlockSpec((None, Nk, 2 * C), lambda b, i: (b, 0, 0)),   # fused kv
            pl.BlockSpec((C, C), lambda b, i: (0, 0)),                 # wo (resident)
            pl.BlockSpec((1, C), lambda b, i: (0, 0)),                 # bias (resident)
        ],
        out_specs=(
            pl.BlockSpec((None, tq, C), lambda b, i: (b, i, 0)),
            pl.BlockSpec((None, num_heads, tq, Nk), lambda b, i: (b, 0, i, 0)),
        ),
        scratch_shapes=[pltpu.VMEM((tq, C), jnp.float32)],
        compiler_params=pltpu.CompilerParams(
            dimension_semantics=("parallel", "parallel"),
            vmem_limit_bytes=_VMEM_LIMIT,
        ),
    )(q, kv, wo_t, b2d)


# --------------------------- CrossAttention module ---------------------------

class CrossAttentionPallas:
    def __init__(self, dim, num_heads=8, dropout=0.1, key=None,
                 attn_dtype=None):
        assert dim % num_heads == 0
        self.dim = dim
        self.num_heads = num_heads
        self.head_dim = dim // num_heads
        self.scale = self.head_dim ** (-0.5)
        # Set attn_dtype=jnp.bfloat16 to halve the attn-weights HBM writeback.
        self.attn_dtype = attn_dtype

        if key is None:
            key = jax.random.PRNGKey(42)
        kq, kk, kv, ko, kb = jax.random.split(key, 5)
        std = 0.02
        # PyTorch nn.Linear weight shape: (out_features, in_features)
        self.w_q = std * jax.random.normal(kq, (dim, dim), jnp.float32)
        self.w_k = std * jax.random.normal(kk, (dim, dim), jnp.float32)
        self.w_v = std * jax.random.normal(kv, (dim, dim), jnp.float32)
        self.w_o = std * jax.random.normal(ko, (dim, dim), jnp.float32)
        self.b_o = std * jax.random.normal(kb, (dim,), jnp.float32)

        # MXU-ready parameter layouts, precomputed ONCE (hoisted out of forward):
        #   * softmax scale folded into Wq (free),
        #   * K/V projections fused so x2 is read from HBM once,
        #   * Wo pre-transposed, bias pre-reshaped for broadcasting.
        self.wq_t = jnp.transpose(self.w_q * self.scale)                      # (C, C)
        self.wkv_t = jnp.transpose(jnp.concatenate([self.w_k, self.w_v], 0))  # (C, 2C)
        self.wo_t = jnp.transpose(self.w_o)                                   # (C, C)
        self.b2d = self.b_o.reshape(1, dim)                                   # (1, C)

    def __call__(self, x1, x2):
        B, Nq, C = x1.shape
        _, Nk, _ = x2.shape          # key/value sequence length from x2

        q = pallas_linear(x1.reshape(B * Nq, C), self.wq_t)      # (B*Nq, C)
        kv = pallas_linear(x2.reshape(B * Nk, C), self.wkv_t)    # (B*Nk, 2C)

        q = q.reshape(B, Nq, C)          # free reshapes (row-major splits)
        kv = kv.reshape(B, Nk, 2 * C)

        # Fused attention + output projection (+bias); no head transposes in XLA.
        out, attn = pallas_attention(q, kv, self.wo_t, self.b2d,
                                     num_heads=self.num_heads,
                                     attn_dtype=self.attn_dtype)

        # dropout is identity in inference mode
        return out, attn


# --------------------------------- reference ---------------------------------

def reference_forward(mod, x1, x2):
    B, Nq, C = x1.shape
    _, Nk, _ = x2.shape
    H, D = mod.num_heads, mod.head_dim
    q = (x1 @ mod.w_q.T).reshape(B, Nq, H, D).transpose(0, 2, 1, 3)
    k = (x2 @ mod.w_k.T).reshape(B, Nk, H, D).transpose(0, 2, 1, 3)
    v = (x2 @ mod.w_v.T).reshape(B, Nk, H, D).transpose(0, 2, 1, 3)
    attn = jnp.einsum("bhqd,bhkd->bhqk", q, k) * mod.scale
    attn = jax.nn.softmax(attn, axis=-1)
    x = jnp.einsum("bhqk,bhkd->bhqd", attn, v).transpose(0, 2, 1, 3).reshape(B, Nq, C)
    x = x @ mod.w_o.T + mod.b_o
    return x, attn


if __name__ == "__main__":
    B, N, C, H = 2, 8, 32, 8  # batch, seq, dim, heads (head_dim = 4)

    key = jax.random.PRNGKey(0)
    k1, k2, kparams = jax.random.split(key, 3)
    x1 = jax.random.normal(k1, (B, N, C), jnp.float32)
    x2 = jax.random.normal(k2, (B, N, C), jnp.float32)

    mod = CrossAttentionPallas(dim=C, num_heads=H, key=kparams)

    out, attn = mod(x1, x2)
    out = jax.block_until_ready(out)
    attn = jax.block_until_ready(attn)

    ref_out, ref_attn = reference_forward(mod, x1, x2)
    assert out.shape == (B, N, C) and attn.shape == (B, H, N, N)
    assert jnp.allclose(out, ref_out, atol=1e-4, rtol=1e-4), \
        float(jnp.max(jnp.abs(out - ref_out)))
    assert jnp.allclose(attn, ref_attn, atol=1e-4, rtol=1e-4), \
        float(jnp.max(jnp.abs(attn - ref_attn)))

    print("KERNEL_OK")
</pallas_src>

<mosaic_0001>
module attributes {stable_mosaic.version = 11 : i64} {
  func.func @_matmul_kernel(%arg0: i32, %arg1: i32, %arg2: i32, %arg3: memref<16x32xf32, #tpu.memory_space<vmem>>, %arg4: memref<32x32xf32, #tpu.memory_space<vmem>>, %arg5: memref<16x32xf32, #tpu.memory_space<vmem>>, %arg6: memref<16x32xf32, #tpu.memory_space<vmem>>) attributes {dimension_semantics = [#tpu.dimension_semantics<parallel>, #tpu.dimension_semantics<parallel>, #tpu.dimension_semantics<arbitrary>], iteration_bounds = array<i64: 1, 1, 1>, scalar_prefetch = 0 : i64, scratch_operands = 1 : i64, tpu.core_type = #tpu.core_type<tc>, window_params = [{transform_indices = @transform_0, window_bounds = array<i64: 16, 32>}, {transform_indices = @transform_1, window_bounds = array<i64: 32, 32>}, {transform_indices = @transform_2, window_bounds = array<i64: 16, 32>}]} {
    %c0_i32 = arith.constant 0 : i32
    %0 = arith.cmpi eq, %arg2, %c0_i32 : i32
    %1 = arith.extui %0 : i1 to i32
    %c0_i32_0 = arith.constant 0 : i32
    %2 = arith.cmpi ne, %1, %c0_i32_0 : i32
    scf.if %2 {
      %cst_10 = arith.constant 0.000000e+00 : f32
      %12 = vector.broadcast %cst_10 : f32 to vector<16x32xf32>
      %c0_11 = arith.constant 0 : index
      %c0_12 = arith.constant 0 : index
      %13 = vector.load %arg6[%c0_11, %c0_12] : memref<16x32xf32, #tpu.memory_space<vmem>>, vector<16x32xf32>
      tpu.vector_store %arg6[%c0_11, %c0_12], %12 {strides = array<i32>} : memref<16x32xf32, #tpu.memory_space<vmem>>, vector<16x32xf32>,
    } else {
    }
    %c0 = arith.constant 0 : index
    %c0_1 = arith.constant 0 : index
    %3 = vector.load %arg6[%c0, %c0_1] : memref<16x32xf32, #tpu.memory_space<vmem>>, vector<16x32xf32>
    %c0_2 = arith.constant 0 : index
    %c0_3 = arith.constant 0 : index
    %4 = vector.load %arg3[%c0_2, %c0_3] : memref<16x32xf32, #tpu.memory_space<vmem>>, vector<16x32xf32>
    %c0_4 = arith.constant 0 : index
    %c0_5 = arith.constant 0 : index
    %5 = vector.load %arg4[%c0_4, %c0_5] : memref<32x32xf32, #tpu.memory_space<vmem>>, vector<32x32xf32>
    %cst = arith.constant dense<0.000000e+00> : vector<16x32xf32>
    %6 = tpu.matmul %4, %5, %cst {dimension_numbers = #tpu.dot_dimension_numbers<[1], [0], [0], [1], [0, 0, 1, 1], [], []>} : vector<16x32xf32>, vector<32x32xf32>, vector<16x32xf32> -> vector<16x32xf32>
    %7 = arith.addf %3, %6 : vector<16x32xf32>
    %c0_6 = arith.constant 0 : index
    %c0_7 = arith.constant 0 : index
    %8 = vector.load %arg6[%c0_6, %c0_7] : memref<16x32xf32, #tpu.memory_space<vmem>>, vector<16x32xf32>
    tpu.vector_store %arg6[%c0_6, %c0_7], %7 {strides = array<i32>} : memref<16x32xf32, #tpu.memory_space<vmem>>, vector<16x32xf32>,
    %c0_i32_8 = arith.constant 0 : i32
    %9 = arith.cmpi eq, %arg2, %c0_i32_8 : i32
    %10 = arith.extui %9 : i1 to i32
    %c0_i32_9 = arith.constant 0 : i32
    %11 = arith.cmpi ne, %10, %c0_i32_9 : i32
    scf.if %11 {
      %c0_10 = arith.constant 0 : index
      %c0_11 = arith.constant 0 : index
      %12 = vector.load %arg6[%c0_10, %c0_11] : memref<16x32xf32, #tpu.memory_space<vmem>>, vector<16x32xf32>
      %c0_12 = arith.constant 0 : index
      %c0_13 = arith.constant 0 : index
      %13 = vector.load %arg5[%c0_12, %c0_13] : memref<16x32xf32, #tpu.memory_space<vmem>>, vector<16x32xf32>
      tpu.vector_store %arg5[%c0_12, %c0_13], %12 {strides = array<i32>} : memref<16x32xf32, #tpu.memory_space<vmem>>, vector<16x32xf32>,
    } else {
    }
    return
  }
  func.func @transform_0(%arg0: i32, %arg1: i32, %arg2: i32) -> (i32, i32) {
    %c0_i32 = arith.constant 0 : i32
    return %arg0, %arg2 : i32, i32
  }
  func.func @transform_1(%arg0: i32, %arg1: i32, %arg2: i32) -> (i32, i32) {
    %c0_i32 = arith.constant 0 : i32
    return %arg2, %arg1 : i32, i32
  }
  func.func @transform_2(%arg0: i32, %arg1: i32, %arg2: i32) -> (i32, i32) {
    %c0_i32 = arith.constant 0 : i32
    return %arg0, %arg1 : i32, i32
  }
}

</mosaic_0001>

<llo_original>
// kernel: tpu_custom_call.1
$region0: #{tpu_custom_call.1}
  #allocation0 [shape = 'u32[]', space=smem, size = 0x4, offset = 0x4, fixed_abs, tag = 'smem constant byte address 0x4 - core index']
  #allocation1 [shape = 'u32[144,128]{1,0:T(1,128)}', space=vmem, size = 0x12000, scoped, tag = 'internal scratch']
  #allocation2 [shape = 'f32[16,32]{1,0:T(8,128)}', space=vmem, size = 0x2000, scoped, tag = 'scratch operand']
  %s0 = inlined_call_operand.hbm [shape: f32[16,32], index: 0, kind: input, shape index: {}]
  %s1 = inlined_call_operand.hbm [shape: f32[32,32], index: 1, kind: input, shape index: {}]
  %s2 = inlined_call_operand.hbm [shape: f32[16,32], index: 2, kind: output, shape index: {}]
  %s3 = sld [smem:[#allocation0]]
  $region34: #{tpu_custom_call.1} parent=0
    _
  %s5 = ssub.s32 1, %s3
  %s6 = scalar_select 0, %s5, %s3
  $region1: #{tpu_custom_call.1} parent=0
    #allocation3 [shape = 'u8[8192]{0}', space=vmem, size = 0x2000, scoped, tag = 'input window, operand 0, single buffered']
    #allocation4 [shape = 's32[1]{0}', space=sflag, size = 0x4, scoped, tag = 'scoped memory for tpu_custom_call.1']
    #allocation5 [shape = 's32[1]{0}', space=sflag, size = 0x4, scoped, tag = 'scoped memory for tpu_custom_call.1']
    #allocation6 [shape = 'u8[16384]{0}', space=vmem, size = 0x4000, scoped, tag = 'input window, operand 1, single buffered']
    #allocation7 [shape = 's32[1]{0}', space=sflag, size = 0x4, scoped, tag = 'scoped memory for tpu_custom_call.1']
    #allocation8 [shape = 'u8[8192]{0}', space=vmem, size = 0x2000, scoped, tag = 'output window, operand 0, single buffered']
    %7 = vsyncpa [#allocation4], 0
    %8 = vsyncpa [#allocation7], 0
    %9 = vsyncpa [#allocation5], 0
    // Predicated region
    $region2: #{tpu_custom_call.1} parent=1 // pred_check
      _
    $region3: #{tpu_custom_call.1} parent=1 // pred_check_branch
      %11 = sbr.rel (0) target = $region5
    $region4: #{tpu_custom_call.1} parent=1 // pred_region
      %s13 = ssub.s32 256, 256
      %14 = vsyncadd [#allocation4], %s13
      %s15 = sshll.u32 [#allocation3], 4
      %s16 = int_to_ptr.vmem [resolvable:$true] %s15
      %21 = dma.hbm_to_vmem [thread:$0]  %s0, 256, %s16, [#allocation4], 128, 128, 8
    $region5: #{tpu_custom_call.1} parent=1 // pred_fallthru
      _
    // Predicated region
    $region6: #{tpu_custom_call.1} parent=1 // pred_check
      _
    $region7: #{tpu_custom_call.1} parent=1 // pred_check_branch
      %23 = sbr.rel (0) target = $region9
    $region8: #{tpu_custom_call.1} parent=1 // pred_region
      %s25 = ssub.s32 512, 512
      %26 = vsyncadd [#allocation7], %s25
      %s27 = sshll.u32 [#allocation6], 4
      %s28 = int_to_ptr.vmem [resolvable:$true] %s27
      %33 = dma.hbm_to_vmem [thread:$0]  %s1, 512, %s28, [#allocation7], 128, 128, 8
    $region9: #{tpu_custom_call.1} parent=1 // pred_fallthru
      _
    // Predicated region
    $region10: #{tpu_custom_call.1} parent=1 // pred_check
      _
    $region11: #{tpu_custom_call.1} parent=1 // pred_check_branch
      %35 = sbr.rel (0) target = $region13
    $region12: #{tpu_custom_call.1} parent=1 // pred_region
      %36 = dma.done [#allocation4], 256
    $region13: #{tpu_custom_call.1} parent=1 // pred_fallthru
      _
    // Predicated region
    $region14: #{tpu_custom_call.1} parent=1 // pred_check
      _
    $region15: #{tpu_custom_call.1} parent=1 // pred_check_branch
      %38 = sbr.rel (0) target = $region17
    $region16: #{tpu_custom_call.1} parent=1 // pred_region
      %39 = dma.done [#allocation7], 512
    $region17: #{tpu_custom_call.1} parent=1 // pred_fallthru
      _
    %p40 = scmp.eq.s32.totalorder 0, 0
    // Predicated region
    $region18: #{tpu_custom_call.1} parent=1 // pred_check
      %p41 = pneg %p40
    $region19: #{tpu_custom_call.1} parent=1 // pred_check_branch
      %43 = sbr.rel (%p41) target = $region21
    $region20: #{tpu_custom_call.1} parent=1 // pred_region
      %vm44 = vcmask 261120
      %45 = vst.msk [vmem:[#allocation2] sm:$0xff] %vm44, 0.0
      %46 = vst.msk [vmem:[#allocation2 + $0x8] sm:$0xff] %vm44, 0.0
    $region21: #{tpu_custom_call.1} parent=1 // pred_fallthru
      _
    %v47 = vld [vmem:[#allocation2] sm:$0xff]
    %v48 = vld [vmem:[#allocation2 + $0x8] sm:$0xff]
    %v49 = vld [vmem:[#allocation3] sm:$0xff]
    %v50 = vld [vmem:[#allocation3 + $0x8] sm:$0xff]
    %v51 = vld [vmem:[#allocation6] sm:$0xff]
    %v52 = vld [vmem:[#allocation6 + $0x8] sm:$0xff]
    %v53 = vld [vmem:[#allocation6 + $0x10] sm:$0xff]
    %v54 = vld [vmem:[#allocation6 + $0x18] sm:$0xff]
    %vm55 = vcmask 261120
    %v57 = vsel %vm55, %v49, 0
    %v60 = vsel %vm55, %v50, 0
    %62 = vmatprep.subr.mxu0 0.0
    %63 = vmatpush1.msra.mxu0 %v51
    %64 = vmatprep.subr.mxu0 0.0
    %65 = vmatpush1.msra.mxu0 %v52
    %66 = vmatprep.subr.mxu0 0.0
    %67 = vmatpush1.msra.mxu0 %v53
    %68 = vmatprep.subr.mxu0 0.0
    %69 = vmatpush1.msra.mxu0 %v54
    %70 = vmatprep.subr.mxu0 0.0
    %71 = vmatpush1.msra.mxu0 0.0
    %72 = vmatprep.subr.mxu0 0.0
    %73 = vmatpush1.msra.mxu0 0.0
    %74 = vmatprep.subr.mxu0 0.0
    %75 = vmatpush1.msra.mxu0 0.0
    %76 = vmatprep.subr.mxu0 0.0
    %77 = vmatpush1.msra.mxu0 0.0
    %78 = vmatprep.subr.mxu0 0.0
    %79 = vmatpush1.msra.mxu0 0.0
    %80 = vmatprep.subr.mxu0 0.0
    %81 = vmatpush1.msra.mxu0 0.0
    %82 = vmatprep.subr.mxu0 0.0
    %83 = vmatpush1.msra.mxu0 0.0
    %84 = vmatprep.subr.mxu0 0.0
    %85 = vmatpush1.msra.mxu0 0.0
    %86 = vmatprep.subr.mxu0 0.0
    %87 = vmatpush1.msra.mxu0 0.0
    %88 = vmatprep.subr.mxu0 0.0
    %89 = vmatpush1.msra.mxu0 0.0
    %90 = vmatprep.subr.mxu0 0.0
    %91 = vmatpush1.msra.mxu0 0.0
    %92 = vmatprep.subr.mxu0 0.0
    %93 = vmatpush1.msra.mxu0 0.0
    %94 = vmatprep.subr.mxu0 0.0
    %95 = vmatpush1.msra.mxu0 0.0
    %96 = vmatprep.subr.mxu0 0.0
    %97 = vmatpush1.msra.mxu0 0.0
    %98 = vmatprep.subr.mxu0 0.0
    %99 = vmatpush1.msra.mxu0 0.0
    %100 = vmatprep.subr.mxu0 0.0
    %101 = vmatpush1.msra.mxu0 0.0
    %102 = vmatprep.subr.mxu0 0.0
    %103 = vmatpush1.msra.mxu0 0.0
    %104 = vmatprep.subr.mxu0 0.0
    %105 = vmatpush1.msra.mxu0 0.0
    %106 = vmatprep.subr.mxu0 0.0
    %107 = vmatpush1.msra.mxu0 0.0
    %108 = vmatprep.subr.mxu0 0.0
    %109 = vmatpush1.msra.mxu0 0.0
    %110 = vmatprep.subr.mxu0 0.0
    %111 = vmatpush1.msra.mxu0 0.0
    %112 = vmatprep.subr.mxu0 0.0
    %113 = vmatpush1.msra.mxu0 0.0
    %114 = vmatprep.subr.mxu0 0.0
    %115 = vmatpush1.msra.mxu0 0.0
    %116 = vmatprep.subr.mxu0 0.0
    %117 = vmatpush1.msra.mxu0 0.0
    %118 = vmatprep.subr.mxu0 0.0
    %119 = vmatpush1.msra.mxu0 0.0
    %120 = vmatprep.subr.mxu0 0.0
    %121 = vmatpush1.msra.mxu0 0.0
    %122 = vmatprep.subr.mxu0 0.0
    %123 = vmatpush1.msra.mxu0 0.0
    %124 = vmatprep.subr.mxu0 0.0
    %125 = vmatpush1.msra.mxu0 0.0
    %126 = vmatprep.mubr.f32.mxu0 0.0
    %127 = vmatmul.mubr.f32.gmra.mrb[0].mxu0 %v57
    %v128 = vpop.f32.mrb[0].mxu0
    %v129 = vadd.f32 0.0, %v128
    %v130 = vpop.f32.mrb[0].mxu0
    %131 = vmatprep.mubr.f32.mxu0 0.0
    %132 = vmatmul.mubr.f32.gmra.mrb[0].mxu0 %v60
    %v133 = vpop.f32.mrb[0].mxu0
    %v134 = vadd.f32 0.0, %v133
    %v135 = vpop.f32.mrb[0].mxu0
    %136 = vdwg.mxu0
    %v137 = vadd.f32 %v47, %v129
    %v138 = vadd.f32 %v48, %v134
    %139 = vst.msk [vmem:[#allocation2] sm:$0xff] %vm55, %v137
    %140 = vst.msk [vmem:[#allocation2 + $0x8] sm:$0xff] %vm55, %v138
    // Predicated region
    $region22: #{tpu_custom_call.1} parent=1 // pred_check
      %p141 = pneg %p40
    $region23: #{tpu_custom_call.1} parent=1 // pred_check_branch
      %143 = sbr.rel (%p141) target = $region25
    $region24: #{tpu_custom_call.1} parent=1 // pred_region
      %v144 = vld [vmem:[#allocation2] sm:$0xff]
      %v145 = vld [vmem:[#allocation2 + $0x8] sm:$0xff]
      %146 = vst.msk [vmem:[#allocation8] sm:$0xff] %vm55, %v144
      %147 = vst.msk [vmem:[#allocation8 + $0x8] sm:$0xff] %vm55, %v145
    $region25: #{tpu_custom_call.1} parent=1 // pred_fallthru
      _
    // Predicated region
    $region26: #{tpu_custom_call.1} parent=1 // pred_check
      _
    $region27: #{tpu_custom_call.1} parent=1 // pred_check_branch
      %149 = sbr.rel (0) target = $region29
    $region28: #{tpu_custom_call.1} parent=1 // pred_region
      %s151 = ssub.s32 256, 256
      %152 = vsyncadd [#allocation5], %s151
      %s153 = sshll.u32 [#allocation8], 4
      %s154 = int_to_ptr.vmem [resolvable:$true] %s153
      %159 = dma.vmem_to_hbm [thread:$0]  %s154, 256, %s2, [#allocation5], 128, 128, 8
    $region29: #{tpu_custom_call.1} parent=1 // pred_fallthru
      _
    // Predicated region
    $region30: #{tpu_custom_call.1} parent=1 // pred_check
      _
    $region31: #{tpu_custom_call.1} parent=1 // pred_check_branch
      %161 = sbr.rel (0) target = $region33
    $region32: #{tpu_custom_call.1} parent=1 // pred_region
      %162 = dma.done [#allocation5], 256
    $region33: #{tpu_custom_call.1} parent=1 // pred_fallthru
      _
    %163 = vsyncpa [#allocation4], 1
    %164 = vsyncpa [#allocation7], 1
    %165 = vsyncpa [#allocation5], 1

</llo_original>
